<compile_context>
chip_gen: v6e
topology: v6e:2x2x1
jax: 0.10.0
libtpu: 0.0.40
codegen_flags: <defaults>
</compile_context>

<pallas_src>
import functools
import math

import jax
import jax.numpy as jnp
from jax.experimental import pallas as pl
from jax.experimental.pallas import tpu as pltpu


def _round_up(n, m):
    return ((n + m - 1) // m) * m


def rnn_kernel(x_ref, wih_ref, whh_ref, bh_ref, wfc_ref, bfc_ref, out_ref,
               xw_ref, *, t_steps, b_pad, in_size):
    """Single-invocation, fully VMEM-resident RNN forward.

    x_ref:   (T*Bp, I)   time-major, batch-padded input (I NOT lane-padded)
    wih_ref: (I, Hp)     input->hidden weight, pre-transposed, lane-padded
    whh_ref: (Hp, Hp)    hidden->hidden weight, pre-transposed, zero-padded
    bh_ref:  (1, Hp)     b_ih + b_hh, zero-padded lanes
    wfc_ref: (Hp, Op)    final linear weight, pre-transposed, zero-padded
    bfc_ref: (1, Op)
    out_ref: (Bp, Op)    lane-dense output slab
    xw_ref:  (T*Bp, Hp)  VMEM scratch for the hoisted input projection
    """
    hp = whh_ref.shape[0]
    tb = xw_ref.shape[0]
    del tb  # shape documented above

    # ---- Hoisted, time-independent input projection (VPU) ----
    # I is tiny (2): one broadcast mul/add per input feature replaces a
    # 128-wide mostly-zero MXU matmul and its weight push. Bias fused once.
    x = x_ref[...]                # (T*Bp, I)
    wih = wih_ref[...]            # (I, Hp)
    xw = bh_ref[...] + x[:, 0:1] * wih[0:1, :]
    for i in range(1, in_size):
        xw = xw + x[:, i:i + 1] * wih[i:i + 1, :]
    xw_ref[...] = xw              # stage in VMEM; recurrence reads aligned rows

    # ---- Serial tanh recurrence (the latency-critical chain) ----
    whh = whh_ref[...]            # loaded once, reused across all steps
    h = jnp.zeros((b_pad, hp), jnp.float32)
    for t in range(t_steps):      # static unroll: compile-time slice offsets
        xw_t = xw_ref[t * b_pad:(t + 1) * b_pad, :]     # static, aligned vld
        h = jnp.tanh(xw_t + jnp.dot(h, whh, preferred_element_type=jnp.float32))

    # ---- Final Linear, lane-dense (Bp, Op) store ----
    out_ref[...] = (
        jnp.dot(h, wfc_ref[...], preferred_element_type=jnp.float32)
        + bfc_ref[...]
    )


def prepare_rnn_params(w_ih, w_hh, b_ih, b_hh, w_fc, b_fc):
    """One-time parameter prep (pad / transpose / fold biases).

    Hoisted out of the per-call forward so the zeros+scatter HLOs and their
    HBM round-trips are amortized across calls.  Padded hidden lanes get zero
    weights + zero bias, so they stay exactly 0 through tanh(0)=0.
    """
    f32 = jnp.float32
    H, I = w_ih.shape
    O = w_fc.shape[0]
    H_pad = _round_up(H, 128)
    O_pad = _round_up(O, 128)

    wih_p = jnp.zeros((I, H_pad), f32).at[:, :H].set(w_ih.T.astype(f32))
    whh_p = jnp.zeros((H_pad, H_pad), f32).at[:H, :H].set(w_hh.T.astype(f32))
    bh_p = jnp.zeros((1, H_pad), f32).at[0, :H].set((b_ih + b_hh).astype(f32))
    wfc_p = jnp.zeros((H_pad, O_pad), f32).at[:H, :O].set(w_fc.T.astype(f32))
    bfc_p = jnp.zeros((1, O_pad), f32).at[0, :O].set(b_fc.astype(f32))
    return dict(wih=wih_p, whh=whh_p, bh=bh_p, wfc=wfc_p, bfc=bfc_p)


def _rnn_forward_impl(x, params, out_size):
    """x: (B, T, I) float32; params: output of prepare_rnn_params."""
    B, T, I = x.shape
    assert T >= 1 and I >= 1, "RNN forward requires T >= 1 and I >= 1"
    wih_p, whh_p = params["wih"], params["whh"]
    bh_p, wfc_p, bfc_p = params["bh"], params["wfc"], params["bfc"]
    assert wih_p.shape[0] == I

    f32 = jnp.float32
    H_pad = whh_p.shape[0]
    O_pad = wfc_p.shape[1]
    B_pad = _round_up(max(B, 8), 8)       # sublane-aligned batch

    # Per-call input glue only: time-major, batch padded to a sublane multiple,
    # flattened to a 2-D slab.  I is NOT padded (VPU projection in the kernel).
    xt = jnp.swapaxes(x.astype(f32), 0, 1)                  # (T, B, I)
    xt = jnp.pad(xt, ((0, 0), (0, B_pad - B), (0, 0)))      # (T, Bp, I)
    xt = xt.reshape(T * B_pad, I)                           # (T*Bp, I)

    kernel = functools.partial(rnn_kernel, t_steps=T, b_pad=B_pad, in_size=I)

    flops = 2 * (T * B_pad * I * H_pad          # input projection (VPU)
                 + T * B_pad * H_pad * H_pad    # recurrence matmuls (MXU)
                 + B_pad * H_pad * O_pad)       # final linear (MXU)
    bytes_accessed = 4 * (xt.size + wih_p.size + whh_p.size + bh_p.size
                          + wfc_p.size + bfc_p.size + B_pad * O_pad)

    vmem = pl.BlockSpec(memory_space=pltpu.MemorySpace.VMEM)
    out_pad = pl.pallas_call(
        kernel,
        out_shape=jax.ShapeDtypeStruct((B_pad, O_pad), f32),
        in_specs=[vmem] * 6,
        out_specs=pl.BlockSpec(memory_space=pltpu.MemorySpace.VMEM),
        scratch_shapes=[pltpu.VMEM((T * B_pad, H_pad), f32)],
        cost_estimate=pl.CostEstimate(
            flops=flops,
            transcendentals=T * B_pad * H_pad,
            bytes_accessed=bytes_accessed),
    )(xt, wih_p, whh_p, bh_p, wfc_p, bfc_p)

    return out_pad[:B, :out_size]


# The x reshape/pad, the pallas_call and the final slice fuse into one jitted
# executable per (shape, out_size); parameter prep stays outside.
rnn_model_forward = jax.jit(_rnn_forward_impl, static_argnames=("out_size",))


def rnn_model_reference(x, w_ih, w_hh, b_ih, b_hh, w_fc, b_fc):
    """Pure-JAX reference of the same forward pass (for validation)."""
    B, T, I = x.shape
    H = w_hh.shape[0]

    def step(h, x_t):
        h_new = jnp.tanh(x_t @ w_ih.T + b_ih + h @ w_hh.T + b_hh)
        return h_new, None

    h0 = jnp.zeros((B, H), jnp.float32)
    h_last, _ = jax.lax.scan(step, h0, jnp.swapaxes(x, 0, 1))
    return h_last @ w_fc.T + b_fc


if __name__ == "__main__":
    # Module config (matches RNNModel defaults).
    input_size, hidden_size, output_size = 2, 64, 2
    B, T = 2, 8

    key = jax.random.PRNGKey(0)
    k_x, k1, k2, k3, k4, k5, k6 = jax.random.split(key, 7)

    # Deterministic parameter init (uniform(-1/sqrt(H), 1/sqrt(H)), PyTorch-style).
    bound = 1.0 / math.sqrt(hidden_size)
    w_ih = jax.random.uniform(k1, (hidden_size, input_size), jnp.float32, -bound, bound)
    w_hh = jax.random.uniform(k2, (hidden_size, hidden_size), jnp.float32, -bound, bound)
    b_ih = jax.random.uniform(k3, (hidden_size,), jnp.float32, -bound, bound)
    b_hh = jax.random.uniform(k4, (hidden_size,), jnp.float32, -bound, bound)
    w_fc = jax.random.uniform(k5, (output_size, hidden_size), jnp.float32, -bound, bound)
    b_fc = jax.random.uniform(k6, (output_size,), jnp.float32, -bound, bound)

    x = jax.random.normal(k_x, (B, T, input_size), jnp.float32)

    # One-time parameter prep (amortized), then the lean per-call forward.
    params = prepare_rnn_params(w_ih, w_hh, b_ih, b_hh, w_fc, b_fc)
    params = jax.tree_util.tree_map(jax.block_until_ready, params)

    out = rnn_model_forward(x, params, out_size=output_size)
    out = jax.block_until_ready(out)

    ref = rnn_model_reference(x, w_ih, w_hh, b_ih, b_hh, w_fc, b_fc)
    assert out.shape == (B, output_size)
    assert jnp.allclose(out, ref, atol=1e-5, rtol=1e-5), (out, ref)

    print("KERNEL_OK")
</pallas_src>

<mosaic_0001>
module attributes {stable_mosaic.version = 11 : i64} {
  func.func @rnn_kernel(%arg0: memref<64x2xf32, #tpu.memory_space<vmem>>, %arg1: memref<2x128xf32, #tpu.memory_space<vmem>>, %arg2: memref<128x128xf32, #tpu.memory_space<vmem>>, %arg3: memref<1x128xf32, #tpu.memory_space<vmem>>, %arg4: memref<128x128xf32, #tpu.memory_space<vmem>>, %arg5: memref<1x128xf32, #tpu.memory_space<vmem>>, %arg6: memref<8x128xf32, #tpu.memory_space<vmem>>, %arg7: memref<64x128xf32, #tpu.memory_space<vmem>>) attributes {dimension_semantics = [], scalar_prefetch = 0 : i64, scratch_operands = 1 : i64, tpu.core_type = #tpu.core_type<tc>} {
    %c0 = arith.constant 0 : index
    %c0_0 = arith.constant 0 : index
    %0 = vector.load %arg0[%c0, %c0_0] : memref<64x2xf32, #tpu.memory_space<vmem>>, vector<64x2xf32>
    %c0_1 = arith.constant 0 : index
    %c0_2 = arith.constant 0 : index
    %1 = vector.load %arg1[%c0_1, %c0_2] : memref<2x128xf32, #tpu.memory_space<vmem>>, vector<2x128xf32>
    %c0_3 = arith.constant 0 : index
    %c0_4 = arith.constant 0 : index
    %2 = vector.load %arg3[%c0_3, %c0_4] : memref<1x128xf32, #tpu.memory_space<vmem>>, vector<1x128xf32>
    %3 = vector.extract_strided_slice %0 {offsets = [0, 0], sizes = [64, 1], strides = [1, 1]} : vector<64x2xf32> to vector<64x1xf32>
    %4 = vector.extract_strided_slice %1 {offsets = [0, 0], sizes = [1, 128], strides = [1, 1]} : vector<2x128xf32> to vector<1x128xf32>
    %5 = vector.broadcast %3 : vector<64x1xf32> to vector<64x128xf32>
    %6 = vector.broadcast %4 : vector<1x128xf32> to vector<64x128xf32>
    %7 = arith.mulf %5, %6 : vector<64x128xf32>
    %8 = vector.broadcast %2 : vector<1x128xf32> to vector<64x128xf32>
    %9 = arith.addf %8, %7 : vector<64x128xf32>
    %10 = vector.extract_strided_slice %0 {offsets = [0, 1], sizes = [64, 1], strides = [1, 1]} : vector<64x2xf32> to vector<64x1xf32>
    %11 = vector.extract_strided_slice %1 {offsets = [1, 0], sizes = [1, 128], strides = [1, 1]} : vector<2x128xf32> to vector<1x128xf32>
    %12 = vector.broadcast %10 : vector<64x1xf32> to vector<64x128xf32>
    %13 = vector.broadcast %11 : vector<1x128xf32> to vector<64x128xf32>
    %14 = arith.mulf %12, %13 : vector<64x128xf32>
    %15 = arith.addf %9, %14 : vector<64x128xf32>
    %c0_5 = arith.constant 0 : index
    %c0_6 = arith.constant 0 : index
    %16 = vector.load %arg7[%c0_5, %c0_6] : memref<64x128xf32, #tpu.memory_space<vmem>>, vector<64x128xf32>
    tpu.vector_store %arg7[%c0_5, %c0_6], %15 {strides = array<i32>} : memref<64x128xf32, #tpu.memory_space<vmem>>, vector<64x128xf32>,
    %c0_7 = arith.constant 0 : index
    %c0_8 = arith.constant 0 : index
    %17 = vector.load %arg2[%c0_7, %c0_8] : memref<128x128xf32, #tpu.memory_space<vmem>>, vector<128x128xf32>
    %cst = arith.constant 0.000000e+00 : f32
    %18 = vector.broadcast %cst : f32 to vector<8x128xf32>
    %c0_9 = arith.constant 0 : index
    %c0_10 = arith.constant 0 : index
    %19 = vector.load %arg7[%c0_9, %c0_10] : memref<64x128xf32, #tpu.memory_space<vmem>>, vector<8x128xf32>
    %cst_11 = arith.constant dense<0.000000e+00> : vector<8x128xf32>
    %20 = tpu.matmul %18, %17, %cst_11 {dimension_numbers = #tpu.dot_dimension_numbers<[1], [0], [0], [1], [0, 0, 1, 1], [], []>} : vector<8x128xf32>, vector<128x128xf32>, vector<8x128xf32> -> vector<8x128xf32>
    %21 = arith.addf %19, %20 : vector<8x128xf32>
    %22 = math.tanh %21 : vector<8x128xf32>
    %c8 = arith.constant 8 : index
    %c0_12 = arith.constant 0 : index
    %23 = vector.load %arg7[%c8, %c0_12] : memref<64x128xf32, #tpu.memory_space<vmem>>, vector<8x128xf32>
    %cst_13 = arith.constant dense<0.000000e+00> : vector<8x128xf32>
    %24 = tpu.matmul %22, %17, %cst_13 {dimension_numbers = #tpu.dot_dimension_numbers<[1], [0], [0], [1], [0, 0, 1, 1], [], []>} : vector<8x128xf32>, vector<128x128xf32>, vector<8x128xf32> -> vector<8x128xf32>
    %25 = arith.addf %23, %24 : vector<8x128xf32>
    %26 = math.tanh %25 : vector<8x128xf32>
    %c16 = arith.constant 16 : index
    %c0_14 = arith.constant 0 : index
    %27 = vector.load %arg7[%c16, %c0_14] : memref<64x128xf32, #tpu.memory_space<vmem>>, vector<8x128xf32>
    %cst_15 = arith.constant dense<0.000000e+00> : vector<8x128xf32>
    %28 = tpu.matmul %26, %17, %cst_15 {dimension_numbers = #tpu.dot_dimension_numbers<[1], [0], [0], [1], [0, 0, 1, 1], [], []>} : vector<8x128xf32>, vector<128x128xf32>, vector<8x128xf32> -> vector<8x128xf32>
    %29 = arith.addf %27, %28 : vector<8x128xf32>
    %30 = math.tanh %29 : vector<8x128xf32>
    %c24 = arith.constant 24 : index
    %c0_16 = arith.constant 0 : index
    %31 = vector.load %arg7[%c24, %c0_16] : memref<64x128xf32, #tpu.memory_space<vmem>>, vector<8x128xf32>
    %cst_17 = arith.constant dense<0.000000e+00> : vector<8x128xf32>
    %32 = tpu.matmul %30, %17, %cst_17 {dimension_numbers = #tpu.dot_dimension_numbers<[1], [0], [0], [1], [0, 0, 1, 1], [], []>} : vector<8x128xf32>, vector<128x128xf32>, vector<8x128xf32> -> vector<8x128xf32>
    %33 = arith.addf %31, %32 : vector<8x128xf32>
    %34 = math.tanh %33 : vector<8x128xf32>
    %c32 = arith.constant 32 : index
    %c0_18 = arith.constant 0 : index
    %35 = vector.load %arg7[%c32, %c0_18] : memref<64x128xf32, #tpu.memory_space<vmem>>, vector<8x128xf32>
    %cst_19 = arith.constant dense<0.000000e+00> : vector<8x128xf32>
    %36 = tpu.matmul %34, %17, %cst_19 {dimension_numbers = #tpu.dot_dimension_numbers<[1], [0], [0], [1], [0, 0, 1, 1], [], []>} : vector<8x128xf32>, vector<128x128xf32>, vector<8x128xf32> -> vector<8x128xf32>
    %37 = arith.addf %35, %36 : vector<8x128xf32>
    %38 = math.tanh %37 : vector<8x128xf32>
    %c40 = arith.constant 40 : index
    %c0_20 = arith.constant 0 : index
    %39 = vector.load %arg7[%c40, %c0_20] : memref<64x128xf32, #tpu.memory_space<vmem>>, vector<8x128xf32>
    %cst_21 = arith.constant dense<0.000000e+00> : vector<8x128xf32>
    %40 = tpu.matmul %38, %17, %cst_21 {dimension_numbers = #tpu.dot_dimension_numbers<[1], [0], [0], [1], [0, 0, 1, 1], [], []>} : vector<8x128xf32>, vector<128x128xf32>, vector<8x128xf32> -> vector<8x128xf32>
    %41 = arith.addf %39, %40 : vector<8x128xf32>
    %42 = math.tanh %41 : vector<8x128xf32>
    %c48 = arith.constant 48 : index
    %c0_22 = arith.constant 0 : index
    %43 = vector.load %arg7[%c48, %c0_22] : memref<64x128xf32, #tpu.memory_space<vmem>>, vector<8x128xf32>
    %cst_23 = arith.constant dense<0.000000e+00> : vector<8x128xf32>
    %44 = tpu.matmul %42, %17, %cst_23 {dimension_numbers = #tpu.dot_dimension_numbers<[1], [0], [0], [1], [0, 0, 1, 1], [], []>} : vector<8x128xf32>, vector<128x128xf32>, vector<8x128xf32> -> vector<8x128xf32>
    %45 = arith.addf %43, %44 : vector<8x128xf32>
    %46 = math.tanh %45 : vector<8x128xf32>
    %c56 = arith.constant 56 : index
    %c0_24 = arith.constant 0 : index
    %47 = vector.load %arg7[%c56, %c0_24] : memref<64x128xf32, #tpu.memory_space<vmem>>, vector<8x128xf32>
    %cst_25 = arith.constant dense<0.000000e+00> : vector<8x128xf32>
    %48 = tpu.matmul %46, %17, %cst_25 {dimension_numbers = #tpu.dot_dimension_numbers<[1], [0], [0], [1], [0, 0, 1, 1], [], []>} : vector<8x128xf32>, vector<128x128xf32>, vector<8x128xf32> -> vector<8x128xf32>
    %49 = arith.addf %47, %48 : vector<8x128xf32>
    %50 = math.tanh %49 : vector<8x128xf32>
    %c0_26 = arith.constant 0 : index
    %c0_27 = arith.constant 0 : index
    %51 = vector.load %arg4[%c0_26, %c0_27] : memref<128x128xf32, #tpu.memory_space<vmem>>, vector<128x128xf32>
    %cst_28 = arith.constant dense<0.000000e+00> : vector<8x128xf32>
    %52 = tpu.matmul %50, %51, %cst_28 {dimension_numbers = #tpu.dot_dimension_numbers<[1], [0], [0], [1], [0, 0, 1, 1], [], []>} : vector<8x128xf32>, vector<128x128xf32>, vector<8x128xf32> -> vector<8x128xf32>
    %c0_29 = arith.constant 0 : index
    %c0_30 = arith.constant 0 : index
    %53 = vector.load %arg5[%c0_29, %c0_30] : memref<1x128xf32, #tpu.memory_space<vmem>>, vector<1x128xf32>
    %54 = vector.broadcast %53 : vector<1x128xf32> to vector<8x128xf32>
    %55 = arith.addf %52, %54 : vector<8x128xf32>
    %c0_31 = arith.constant 0 : index
    %c0_32 = arith.constant 0 : index
    %56 = vector.load %arg6[%c0_31, %c0_32] : memref<8x128xf32, #tpu.memory_space<vmem>>, vector<8x128xf32>
    tpu.vector_store %arg6[%c0_31, %c0_32], %55 {strides = array<i32>} : memref<8x128xf32, #tpu.memory_space<vmem>>, vector<8x128xf32>,
    return
  }
}

</mosaic_0001>

<llo_original>
// kernel: _rnn_forward_impl.1
$region0: #{_rnn_forward_impl.1}
  #allocation0 [shape = 'u32[]', space=smem, size = 0x4, offset = 0x4, fixed_abs, tag = 'smem constant byte address 0x4 - core index']
  #allocation1 [shape = 'u32[144,128]{1,0:T(1,128)}', space=vmem, size = 0x12000, scoped, tag = 'internal scratch']
  #allocation2 [shape = 'f32[64,128]{1,0:T(8,128)}', space=vmem, size = 0x8000, scoped, tag = 'scratch operand']
  %s0 = inlined_call_operand.vmem [shape: f32[64,2], index: 0, kind: input, shape index: {}]
  %s1 = inlined_call_operand.vmem [shape: f32[2,128], index: 1, kind: input, shape index: {}]
  %s2 = inlined_call_operand.hbm [shape: f32[128,128], index: 2, kind: input, shape index: {}]
  %s3 = inlined_call_operand.vmem [shape: f32[1,128], index: 3, kind: input, shape index: {}]
  %s4 = inlined_call_operand.hbm [shape: f32[128,128], index: 4, kind: input, shape index: {}]
  %s5 = inlined_call_operand.vmem [shape: f32[1,128], index: 5, kind: input, shape index: {}]
  %s6 = inlined_call_operand.vmem [shape: f32[8,128], index: 6, kind: output, shape index: {}]
  %s7 = sld [smem:[#allocation0]]
  $region42: #{_rnn_forward_impl.1} parent=0
    _
  %s9 = ssub.s32 1, %s7
  %s10 = scalar_select 0, %s9, %s7
  $region1: #{_rnn_forward_impl.1} parent=0
    #allocation3 [shape = 'u8[65536]{0}', space=vmem, size = 0x10000, scoped, tag = 'input window, operand 2, single buffered']
    #allocation4 [shape = 's32[1]{0}', space=sflag, size = 0x4, scoped, tag = 'scoped memory for _rnn_forward_impl.1']
    #allocation5 [shape = 'u8[65536]{0}', space=vmem, size = 0x10000, scoped, tag = 'input window, operand 4, single buffered']
    #allocation6 [shape = 's32[1]{0}', space=sflag, size = 0x4, scoped, tag = 'scoped memory for _rnn_forward_impl.1']
    %11 = vsyncpa [#allocation4], 0
    %12 = vsyncpa [#allocation6], 0
    // Predicated region
    $region2: #{_rnn_forward_impl.1} parent=1 // pred_check
      _
    $region3: #{_rnn_forward_impl.1} parent=1 // pred_check_branch
      %14 = sbr.rel (0) target = $region5
    $region4: #{_rnn_forward_impl.1} parent=1 // pred_region
      _
    $region5: #{_rnn_forward_impl.1} parent=1 // pred_fallthru
      _
    // Predicated region
    $region6: #{_rnn_forward_impl.1} parent=1 // pred_check
      _
    $region7: #{_rnn_forward_impl.1} parent=1 // pred_check_branch
      %16 = sbr.rel (0) target = $region9
    $region8: #{_rnn_forward_impl.1} parent=1 // pred_region
      _
    $region9: #{_rnn_forward_impl.1} parent=1 // pred_fallthru
      _
    // Predicated region
    $region10: #{_rnn_forward_impl.1} parent=1 // pred_check
      _
    $region11: #{_rnn_forward_impl.1} parent=1 // pred_check_branch
      %18 = sbr.rel (0) target = $region13
    $region12: #{_rnn_forward_impl.1} parent=1 // pred_region
      %s20 = ssub.s32 2048, 2048
      %21 = vsyncadd [#allocation4], %s20
      %s22 = sshll.u32 [#allocation3], 4
      %s23 = int_to_ptr.vmem [resolvable:$true] %s22
      %28 = dma.hbm_to_vmem [thread:$0]  %s2, 2048, %s23, [#allocation4], 128, 128, 8
    $region13: #{_rnn_forward_impl.1} parent=1 // pred_fallthru
      _
    // Predicated region
    $region14: #{_rnn_forward_impl.1} parent=1 // pred_check
      _
    $region15: #{_rnn_forward_impl.1} parent=1 // pred_check_branch
      %30 = sbr.rel (0) target = $region17
    $region16: #{_rnn_forward_impl.1} parent=1 // pred_region
      _
    $region17: #{_rnn_forward_impl.1} parent=1 // pred_fallthru
      _
    // Predicated region
    $region18: #{_rnn_forward_impl.1} parent=1 // pred_check
      _
    $region19: #{_rnn_forward_impl.1} parent=1 // pred_check_branch
      %32 = sbr.rel (0) target = $region21
    $region20: #{_rnn_forward_impl.1} parent=1 // pred_region
      %s34 = ssub.s32 2048, 2048
      %35 = vsyncadd [#allocation6], %s34
      %s36 = sshll.u32 [#allocation5], 4
      %s37 = int_to_ptr.vmem [resolvable:$true] %s36
      %42 = dma.hbm_to_vmem [thread:$0]  %s4, 2048, %s37, [#allocation6], 128, 128, 8
    $region21: #{_rnn_forward_impl.1} parent=1 // pred_fallthru
      _
    // Predicated region
    $region22: #{_rnn_forward_impl.1} parent=1 // pred_check
      _
    $region23: #{_rnn_forward_impl.1} parent=1 // pred_check_branch
      %44 = sbr.rel (0) target = $region25
    $region24: #{_rnn_forward_impl.1} parent=1 // pred_region
      _
    $region25: #{_rnn_forward_impl.1} parent=1 // pred_fallthru
      _
    // Predicated region
    $region26: #{_rnn_forward_impl.1} parent=1 // pred_check
      _
    $region27: #{_rnn_forward_impl.1} parent=1 // pred_check_branch
      %46 = sbr.rel (0) target = $region29
    $region28: #{_rnn_forward_impl.1} parent=1 // pred_region
      %47 = dma.done [#allocation4], 2048
    $region29: #{_rnn_forward_impl.1} parent=1 // pred_fallthru
      _
    // Predicated region
    $region30: #{_rnn_forward_impl.1} parent=1 // pred_check
      _
    $region31: #{_rnn_forward_impl.1} parent=1 // pred_check_branch
      %49 = sbr.rel (0) target = $region33
    $region32: #{_rnn_forward_impl.1} parent=1 // pred_region
      %50 = dma.done [#allocation6], 2048
    $region33: #{_rnn_forward_impl.1} parent=1 // pred_fallthru
      _
    %v51 = vld [vmem:[%s0] sm:$0xff]
    %v52 = vld [vmem:[%s0 + $0x8] sm:$0xff]
    %v53 = vld [vmem:[%s0 + $0x10] sm:$0xff]
    %v54 = vld [vmem:[%s0 + $0x18] sm:$0xff]
    %v55 = vld [vmem:[%s0 + $0x20] sm:$0xff]
    %v56 = vld [vmem:[%s0 + $0x28] sm:$0xff]
    %v57 = vld [vmem:[%s0 + $0x30] sm:$0xff]
    %v58 = vld [vmem:[%s0 + $0x38] sm:$0xff]
    %v59 = vld [vmem:[%s1] sm:$0x3]
    %v60 = vld [vmem:[%s3] sm:$0x1]
    %62 = vset.pattern.permute.xlu0 0
    %63 = vperm.xlu0 %62, %v51
    %v64 = vpop.permute.xlu0 %63
    %67 = vset.pattern.permute.xlu0 0
    %68 = vperm.xlu0 %67, %v52
    %v69 = vpop.permute.xlu0 %68
    %72 = vset.pattern.permute.xlu0 0
    %73 = vperm.xlu0 %72, %v53
    %v74 = vpop.permute.xlu0 %73
    %77 = vset.pattern.permute.xlu0 0
    %78 = vperm.xlu0 %77, %v54
    %v79 = vpop.permute.xlu0 %78
    %82 = vset.pattern.permute.xlu0 0
    %83 = vperm.xlu0 %82, %v55
    %v84 = vpop.permute.xlu0 %83
    %87 = vset.pattern.permute.xlu0 0
    %88 = vperm.xlu0 %87, %v56
    %v89 = vpop.permute.xlu0 %88
    %92 = vset.pattern.permute.xlu0 0
    %93 = vperm.xlu0 %92, %v57
    %v94 = vpop.permute.xlu0 %93
    %97 = vset.pattern.permute.xlu0 0
    %98 = vperm.xlu0 %97, %v58
    %v99 = vpop.permute.xlu0 %98
    %v101 = vlaneseq
    %v102 = vshrl.u32 %v101, 7
    %v103 = vsub.s32 0, %v102
    %v104 = vrot.slane %v59, %v103
    %v105 = vmul.f32 %v64, %v104
    %v106 = vmul.f32 %v69, %v104
    %v107 = vmul.f32 %v74, %v104
    %v108 = vmul.f32 %v79, %v104
    %v109 = vmul.f32 %v84, %v104
    %v110 = vmul.f32 %v89, %v104
    %v111 = vmul.f32 %v94, %v104
    %v112 = vmul.f32 %v99, %v104
    %v114 = vlaneseq
    %v115 = vshrl.u32 %v114, 7
    %v116 = vsub.s32 0, %v115
    %v117 = vrot.slane %v60, %v116
    %v119 = vadd.f32 %v117, %v105
    %v120 = vadd.f32 %v117, %v106
    %v121 = vadd.f32 %v117, %v107
    %v122 = vadd.f32 %v117, %v108
    %v123 = vadd.f32 %v117, %v109
    %v124 = vadd.f32 %v117, %v110
    %v125 = vadd.f32 %v117, %v111
    %v126 = vadd.f32 %v117, %v112
    %127 = vset.pattern.permute.xlu0 1
    %128 = vperm.xlu0 %127, %v51
    %v129 = vpop.permute.xlu0 %128
    %131 = vset.pattern.permute.xlu0 1
    %132 = vperm.xlu0 %131, %v52
    %v133 = vpop.permute.xlu0 %132
    %135 = vset.pattern.permute.xlu0 1
    %136 = vperm.xlu0 %135, %v53
    %v137 = vpop.permute.xlu0 %136
    %139 = vset.pattern.permute.xlu0 1
    %140 = vperm.xlu0 %139, %v54
    %v141 = vpop.permute.xlu0 %140
    %143 = vset.pattern.permute.xlu0 1
    %144 = vperm.xlu0 %143, %v55
    %v145 = vpop.permute.xlu0 %144
    %147 = vset.pattern.permute.xlu0 1
    %148 = vperm.xlu0 %147, %v56
    %v149 = vpop.permute.xlu0 %148
    %151 = vset.pattern.permute.xlu0 1
    %152 = vperm.xlu0 %151, %v57
    %v153 = vpop.permute.xlu0 %152
    %155 = vset.pattern.permute.xlu0 1
    %156 = vperm.xlu0 %155, %v58
    %v157 = vpop.permute.xlu0 %156
    %v159 = vlaneseq
    %v160 = vshrl.u32 %v159, 7
    %v161 = vsub.s32 1, %v160
    %v162 = vrot.slane %v59, %v161
    %v163 = vmul.f32 %v129, %v162
    %v164 = vmul.f32 %v133, %v162
    %v165 = vmul.f32 %v137, %v162
    %v166 = vmul.f32 %v141, %v162
    %v167 = vmul.f32 %v145, %v162
    %v168 = vmul.f32 %v149, %v162
    %v169 = vmul.f32 %v153, %v162
    %v170 = vmul.f32 %v157, %v162
    %v171 = vadd.f32 %v119, %v163
    %v172 = vadd.f32 %v120, %v164
    %v173 = vadd.f32 %v121, %v165
    %v174 = vadd.f32 %v122, %v166
    %v175 = vadd.f32 %v123, %v167
    %v176 = vadd.f32 %v124, %v168
    %v177 = vadd.f32 %v125, %v169
    %v178 = vadd.f32 %v126, %v170
    %179 = vst [vmem:[#allocation2] sm:$0xff] %v171
    %180 = vst [vmem:[#allocation2 + $0x8] sm:$0xff] %v172
    %181 = vst [vmem:[#allocation2 + $0x10] sm:$0xff] %v173
    %182 = vst [vmem:[#allocation2 + $0x18] sm:$0xff] %v174
    %183 = vst [vmem:[#allocation2 + $0x20] sm:$0xff] %v175
    %184 = vst [vmem:[#allocation2 + $0x28] sm:$0xff] %v176
    %185 = vst [vmem:[#allocation2 + $0x30] sm:$0xff] %v177
    %186 = vst [vmem:[#allocation2 + $0x38] sm:$0xff] %v178
    %v187 = vld [vmem:[#allocation3] sm:$0xff]
    %v188 = vld [vmem:[#allocation3 + $0x8] sm:$0xff]
    %v189 = vld [vmem:[#allocation3 + $0x10] sm:$0xff]
    %v190 = vld [vmem:[#allocation3 + $0x18] sm:$0xff]
    %v191 = vld [vmem:[#allocation3 + $0x20] sm:$0xff]
    %v192 = vld [vmem:[#allocation3 + $0x28] sm:$0xff]
    %v193 = vld [vmem:[#allocation3 + $0x30] sm:$0xff]
    %v194 = vld [vmem:[#allocation3 + $0x38] sm:$0xff]
    %v195 = vld [vmem:[#allocation3 + $0x40] sm:$0xff]
    %v196 = vld [vmem:[#allocation3 + $0x48] sm:$0xff]
    %v197 = vld [vmem:[#allocation3 + $0x50] sm:$0xff]
    %v198 = vld [vmem:[#allocation3 + $0x58] sm:$0xff]
    %v199 = vld [vmem:[#allocation3 + $0x60] sm:$0xff]
    %v200 = vld [vmem:[#allocation3 + $0x68] sm:$0xff]
    %v201 = vld [vmem:[#allocation3 + $0x70] sm:$0xff]
    %v202 = vld [vmem:[#allocation3 + $0x78] sm:$0xff]
    %v203 = vld [vmem:[#allocation2] sm:$0xff]
    %204 = vmatprep.subr.mxu0 0.0
    %205 = vmatpush1.msra.mxu0 %v202
    %206 = vmatprep.subr.mxu0 0.0
    %207 = vmatpush1.msra.mxu0 %v201
    %208 = vmatprep.subr.mxu0 0.0
    %209 = vmatpush1.msra.mxu0 %v200
    %210 = vmatprep.subr.mxu0 0.0
    %211 = vmatpush1.msra.mxu0 %v199
    %212 = vmatprep.subr.mxu0 0.0
    %213 = vmatpush1.msra.mxu0 %v198
    %214 = vmatprep.subr.mxu0 0.0
    %215 = vmatpush1.msra.mxu0 %v197
    %216 = vmatprep.subr.mxu0 0.0
    %217 = vmatpush1.msra.mxu0 %v196
    %218 = vmatprep.subr.mxu0 0.0
    %219 = vmatpush1.msra.mxu0 %v195
    %220 = vmatprep.subr.mxu0 0.0
    %221 = vmatpush1.msra.mxu0 %v194
    %222 = vmatprep.subr.mxu0 0.0
    %223 = vmatpush1.msra.mxu0 %v193
    %224 = vmatprep.subr.mxu0 0.0
    %225 = vmatpush1.msra.mxu0 %v192
    %226 = vmatprep.subr.mxu0 0.0
    %227 = vmatpush1.msra.mxu0 %v191
    %228 = vmatprep.subr.mxu0 0.0
    %229 = vmatpush1.msra.mxu0 %v190
    %230 = vmatprep.subr.mxu0 0.0
    %231 = vmatpush1.msra.mxu0 %v189
    %232 = vmatprep.subr.mxu0 0.0
    %233 = vmatpush1.msra.mxu0 %v188
    %234 = vmatprep.subr.mxu0 0.0
    %235 = vmatpush1.msra.mxu0 %v187
    %236 = vmatprep.subr.mxu0 0.0
    %237 = vmatpush2.msra.mxu0 0.0
    %238 = vmatprep.subr.mxu0 0.0
    %239 = vmatpush2.msra.mxu0 0.0
    %240 = vmatprep.subr.mxu0 0.0
    %241 = vmatpush2.msra.mxu0 0.0
    %242 = vmatprep.subr.mxu0 0.0
    %243 = vmatpush2.msra.mxu0 0.0
    %244 = vmatprep.subr.mxu0 0.0
    %245 = vmatpush2.msra.mxu0 0.0
    %246 = vmatprep.subr.mxu0 0.0
    %247 = vmatpush2.msra.mxu0 0.0
    %248 = vmatprep.subr.mxu0 0.0
    %249 = vmatpush2.msra.mxu0 0.0
    %250 = vmatprep.subr.mxu0 0.0
    %251 = vmatpush2.msra.mxu0 0.0
    %252 = vmatprep.subr.mxu0 0.0
    %253 = vmatpush2.msra.mxu0 0.0
    %254 = vmatprep.subr.mxu0 0.0
    %255 = vmatpush2.msra.mxu0 0.0
    %256 = vmatprep.subr.mxu0 0.0
    %257 = vmatpush2.msra.mxu0 0.0
    %258 = vmatprep.subr.mxu0 0.0
    %259 = vmatpush2.msra.mxu0 0.0
    %260 = vmatprep.subr.mxu0 0.0
    %261 = vmatpush2.msra.mxu0 0.0
    %262 = vmatprep.subr.mxu0 0.0
    %263 = vmatpush2.msra.mxu0 0.0
    %264 = vmatprep.subr.mxu0 0.0
    %265 = vmatpush2.msra.mxu0 0.0
    %266 = vmatprep.subr.mxu0 0.0
    %267 = vmatpush2.msra.mxu0 0.0
    %268 = vmatprep.mubr.f32.mxu0 0.0
    %269 = vmatmul.mubr.f32.gmra.mxu0 0.0
    %v270 = vpop.f32.mrf.mxu0
    %v271 = vadd.f32 0.0, %v270
    %v272 = vpop.f32.mrf.mxu0
    %273 = vdwg.mxu0
    %v274 = vadd.f32 %v203, %v271
    %v275 = vtanh.pop %v274
    %v276 = vld [vmem:[#allocation2 + $0x8] sm:$0xff]
    %277 = vmatprep.subr.mxu0 0.0
    %278 = vmatpush1.msra.mxu0 %v202
    %279 = vmatprep.subr.mxu0 0.0
    %280 = vmatpush1.msra.mxu0 %v201
    %281 = vmatprep.subr.mxu0 0.0
    %282 = vmatpush1.msra.mxu0 %v200
    %283 = vmatprep.subr.mxu0 0.0
    %284 = vmatpush1.msra.mxu0 %v199
    %285 = vmatprep.subr.mxu0 0.0
    %286 = vmatpush1.msra.mxu0 %v198
    %287 = vmatprep.subr.mxu0 0.0
    %288 = vmatpush1.msra.mxu0 %v197
    %289 = vmatprep.subr.mxu0 0.0
    %290 = vmatpush1.msra.mxu0 %v196
    %291 = vmatprep.subr.mxu0 0.0
    %292 = vmatpush1.msra.mxu0 %v195
    %293 = vmatprep.subr.mxu0 0.0
    %294 = vmatpush1.msra.mxu0 %v194
    %295 = vmatprep.subr.mxu0 0.0
    %296 = vmatpush1.msra.mxu0 %v193
    %297 = vmatprep.subr.mxu0 0.0
    %298 = vmatpush1.msra.mxu0 %v192
    %299 = vmatprep.subr.mxu0 0.0
    %300 = vmatpush1.msra.mxu0 %v191
    %301 = vmatprep.subr.mxu0 0.0
    %302 = vmatpush1.msra.mxu0 %v190
    %303 = vmatprep.subr.mxu0 0.0
    %304 = vmatpush1.msra.mxu0 %v189
    %305 = vmatprep.subr.mxu0 0.0
    %306 = vmatpush1.msra.mxu0 %v188
    %307 = vmatprep.subr.mxu0 0.0
    %308 = vmatpush1.msra.mxu0 %v187
    %309 = vmatprep.subr.mxu0 0.0
    %310 = vmatpush2.msra.mxu0 0.0
    %311 = vmatprep.subr.mxu0 0.0
    %312 = vmatpush2.msra.mxu0 0.0
    %313 = vmatprep.subr.mxu0 0.0
    %314 = vmatpush2.msra.mxu0 0.0
    %315 = vmatprep.subr.mxu0 0.0
    %316 = vmatpush2.msra.mxu0 0.0
    %317 = vmatprep.subr.mxu0 0.0
    %318 = vmatpush2.msra.mxu0 0.0
    %319 = vmatprep.subr.mxu0 0.0
    %320 = vmatpush2.msra.mxu0 0.0
    %321 = vmatprep.subr.mxu0 0.0
    %322 = vmatpush2.msra.mxu0 0.0
    %323 = vmatprep.subr.mxu0 0.0
    %324 = vmatpush2.msra.mxu0 0.0
    %325 = vmatprep.subr.mxu0 0.0
    %326 = vmatpush2.msra.mxu0 0.0
    %327 = vmatprep.subr.mxu0 0.0
    %328 = vmatpush2.msra.mxu0 0.0
    %329 = vmatprep.subr.mxu0 0.0
    %330 = vmatpush2.msra.mxu0 0.0
    %331 = vmatprep.subr.mxu0 0.0
    %332 = vmatpush2.msra.mxu0 0.0
    %333 = vmatprep.subr.mxu0 0.0
    %334 = vmatpush2.msra.mxu0 0.0
    %335 = vmatprep.subr.mxu0 0.0
    %336 = vmatpush2.msra.mxu0 0.0
    %337 = vmatprep.subr.mxu0 0.0
    %338 = vmatpush2.msra.mxu0 0.0
    %339 = vmatprep.subr.mxu0 0.0
    %340 = vmatpush2.msra.mxu0 0.0
    %341 = vmatprep.mubr.f32.mxu0 0.0
    %342 = vmatmul.mubr.f32.gmra.mxu0 %v275
    %v343 = vpop.f32.mrf.mxu0
    %v344 = vadd.f32 0.0, %v343
    %v345 = vpop.f32.mrf.mxu0
    %346 = vdwg.mxu0
    %v347 = vadd.f32 %v276, %v344
    %v348 = vtanh.pop %v347
    %v349 = vld [vmem:[#allocation2 + $0x10] sm:$0xff]
    %350 = vmatprep.subr.mxu0 0.0
    %351 = vmatpush1.msra.mxu0 %v202
    %352 = vmatprep.subr.mxu0 0.0
    %353 = vmatpush1.msra.mxu0 %v201
    %354 = vmatprep.subr.mxu0 0.0
    %355 = vmatpush1.msra.mxu0 %v200
    %356 = vmatprep.subr.mxu0 0.0
    %357 = vmatpush1.msra.mxu0 %v199
    %358 = vmatprep.subr.mxu0 0.0
    %359 = vmatpush1.msra.mxu0 %v198
    %360 = vmatprep.subr.mxu0 0.0
    %361 = vmatpush1.msra.mxu0 %v197
    %362 = vmatprep.subr.mxu0 0.0
    %363 = vmatpush1.msra.mxu0 %v196
    %364 = vmatprep.subr.mxu0 0.0
    %365 = vmatpush1.msra.mxu0 %v195
    %366 = vmatprep.subr.mxu0 0.0
    %367 = vmatpush1.msra.mxu0 %v194
    %368 = vmatprep.subr.mxu0 0.0
    %369 = vmatpush1.msra.mxu0 %v193
    %370 = vmatprep.subr.mxu0 0.0
    %371 = vmatpush1.msra.mxu0 %v192
    %372 = vmatprep.subr.mxu0 0.0
    %373 = vmatpush1.msra.mxu0 %v191
    %374 = vmatprep.subr.mxu0 0.0
    %375 = vmatpush1.msra.mxu0 %v190
    %376 = vmatprep.subr.mxu0 0.0
    %377 = vmatpush1.msra.mxu0 %v189
    %378 = vmatprep.subr.mxu0 0.0
    %379 = vmatpush1.msra.mxu0 %v188
    %380 = vmatprep.subr.mxu0 0.0
    %381 = vmatpush1.msra.mxu0 %v187
    %382 = vmatprep.subr.mxu0 0.0
    %383 = vmatpush2.msra.mxu0 0.0
    %384 = vmatprep.subr.mxu0 0.0
    %385 = vmatpush2.msra.mxu0 0.0
    %386 = vmatprep.subr.mxu0 0.0
    %387 = vmatpush2.msra.mxu0 0.0
    %388 = vmatprep.subr.mxu0 0.0
    %389 = vmatpush2.msra.mxu0 0.0
    %390 = vmatprep.subr.mxu0 0.0
    %391 = vmatpush2.msra.mxu0 0.0
    %392 = vmatprep.subr.mxu0 0.0
    %393 = vmatpush2.msra.mxu0 0.0
    %394 = vmatprep.subr.mxu0 0.0
    %395 = vmatpush2.msra.mxu0 0.0
    %396 = vmatprep.subr.mxu0 0.0
    %397 = vmatpush2.msra.mxu0 0.0
    %398 = vmatprep.subr.mxu0 0.0
    %399 = vmatpush2.msra.mxu0 0.0
    %400 = vmatprep.subr.mxu0 0.0
    %401 = vmatpush2.msra.mxu0 0.0
    %402 = vmatprep.subr.mxu0 0.0
    %403 = vmatpush2.msra.mxu0 0.0
    %404 = vmatprep.subr.mxu0 0.0
    %405 = vmatpush2.msra.mxu0 0.0
    %406 = vmatprep.subr.mxu0 0.0
    %407 = vmatpush2.msra.mxu0 0.0
    %408 = vmatprep.subr.mxu0 0.0
    %409 = vmatpush2.msra.mxu0 0.0
    %410 = vmatprep.subr.mxu0 0.0
    %411 = vmatpush2.msra.mxu0 0.0
    %412 = vmatprep.subr.mxu0 0.0
    %413 = vmatpush2.msra.mxu0 0.0
    %414 = vmatprep.mubr.f32.mxu0 0.0
    %415 = vmatmul.mubr.f32.gmra.mxu0 %v348
    %v416 = vpop.f32.mrf.mxu0
    %v417 = vadd.f32 0.0, %v416
    %v418 = vpop.f32.mrf.mxu0
    %419 = vdwg.mxu0
    %v420 = vadd.f32 %v349, %v417
    %v421 = vtanh.pop %v420
    %v422 = vld [vmem:[#allocation2 + $0x18] sm:$0xff]
    %423 = vmatprep.subr.mxu0 0.0
    %424 = vmatpush1.msra.mxu0 %v202
    %425 = vmatprep.subr.mxu0 0.0
    %426 = vmatpush1.msra.mxu0 %v201
    %427 = vmatprep.subr.mxu0 0.0
    %428 = vmatpush1.msra.mxu0 %v200
    %429 = vmatprep.subr.mxu0 0.0
    %430 = vmatpush1.msra.mxu0 %v199
    %431 = vmatprep.subr.mxu0 0.0
    %432 = vmatpush1.msra.mxu0 %v198
    %433 = vmatprep.subr.mxu0 0.0
    %434 = vmatpush1.msra.mxu0 %v197
    %435 = vmatprep.subr.mxu0 0.0
    %436 = vmatpush1.msra.mxu0 %v196
    %437 = vmatprep.subr.mxu0 0.0
    %438 = vmatpush1.msra.mxu0 %v195
    %439 = vmatprep.subr.mxu0 0.0
    %440 = vmatpush1.msra.mxu0 %v194
    %441 = vmatprep.subr.mxu0 0.0
    %442 = vmatpush1.msra.mxu0 %v193
    %443 = vmatprep.subr.mxu0 0.0
    %444 = vmatpush1.msra.mxu0 %v192
    %445 = vmatprep.subr.mxu0 0.0
    %446 = vmatpush1.msra.mxu0 %v191
    %447 = vmatprep.subr.mxu0 0.0
    %448 = vmatpush1.msra.mxu0 %v190
    %449 = vmatprep.subr.mxu0 0.0
    %450 = vmatpush1.msra.mxu0 %v189
    %451 = vmatprep.subr.mxu0 0.0
    %452 = vmatpush1.msra.mxu0 %v188
    %453 = vmatprep.subr.mxu0 0.0
    %454 = vmatpush1.msra.mxu0 %v187
    %455 = vmatprep.subr.mxu0 0.0
    %456 = vmatpush2.msra.mxu0 0.0
    %457 = vmatprep.subr.mxu0 0.0
    %458 = vmatpush2.msra.mxu0 0.0
    %459 = vmatprep.subr.mxu0 0.0
    %460 = vmatpush2.msra.mxu0 0.0
    %461 = vmatprep.subr.mxu0 0.0
    %462 = vmatpush2.msra.mxu0 0.0
    %463 = vmatprep.subr.mxu0 0.0
    %464 = vmatpush2.msra.mxu0 0.0
    %465 = vmatprep.subr.mxu0 0.0
    %466 = vmatpush2.msra.mxu0 0.0
    %467 = vmatprep.subr.mxu0 0.0
    %468 = vmatpush2.msra.mxu0 0.0
    %469 = vmatprep.subr.mxu0 0.0
    %470 = vmatpush2.msra.mxu0 0.0
    %471 = vmatprep.subr.mxu0 0.0
    %472 = vmatpush2.msra.mxu0 0.0
    %473 = vmatprep.subr.mxu0 0.0
    %474 = vmatpush2.msra.mxu0 0.0
    %475 = vmatprep.subr.mxu0 0.0
    %476 = vmatpush2.msra.mxu0 0.0
    %477 = vmatprep.subr.mxu0 0.0
    %478 = vmatpush2.msra.mxu0 0.0
    %479 = vmatprep.subr.mxu0 0.0
    %480 = vmatpush2.msra.mxu0 0.0
    %481 = vmatprep.subr.mxu0 0.0
    %482 = vmatpush2.msra.mxu0 0.0
    %483 = vmatprep.subr.mxu0 0.0
    %484 = vmatpush2.msra.mxu0 0.0
    %485 = vmatprep.subr.mxu0 0.0
    %486 = vmatpush2.msra.mxu0 0.0
    %487 = vmatprep.mubr.f32.mxu0 0.0
    %488 = vmatmul.mubr.f32.gmra.mxu0 %v421
    %v489 = vpop.f32.mrf.mxu0
    %v490 = vadd.f32 0.0, %v489
    %v491 = vpop.f32.mrf.mxu0
    %492 = vdwg.mxu0
    %v493 = vadd.f32 %v422, %v490
    %v494 = vtanh.pop %v493
    %v495 = vld [vmem:[#allocation2 + $0x20] sm:$0xff]
    %496 = vmatprep.subr.mxu0 0.0
    %497 = vmatpush1.msra.mxu0 %v202
    %498 = vmatprep.subr.mxu0 0.0
    %499 = vmatpush1.msra.mxu0 %v201
    %500 = vmatprep.subr.mxu0 0.0
    %501 = vmatpush1.msra.mxu0 %v200
    %502 = vmatprep.subr.mxu0 0.0
    %503 = vmatpush1.msra.mxu0 %v199
    %504 = vmatprep.subr.mxu0 0.0
    %505 = vmatpush1.msra.mxu0 %v198
    %506 = vmatprep.subr.mxu0 0.0
    %507 = vmatpush1.msra.mxu0 %v197
    %508 = vmatprep.subr.mxu0 0.0
    %509 = vmatpush1.msra.mxu0 %v196
    %510 = vmatprep.subr.mxu0 0.0
    %511 = vmatpush1.msra.mxu0 %v195
    %512 = vmatprep.subr.mxu0 0.0
    %513 = vmatpush1.msra.mxu0 %v194
    %514 = vmatprep.subr.mxu0 0.0
    %515 = vmatpush1.msra.mxu0 %v193
    %516 = vmatprep.subr.mxu0 0.0
    %517 = vmatpush1.msra.mxu0 %v192
    %518 = vmatprep.subr.mxu0 0.0
    %519 = vmatpush1.msra.mxu0 %v191
    %520 = vmatprep.subr.mxu0 0.0
    %521 = vmatpush1.msra.mxu0 %v190
    %522 = vmatprep.subr.mxu0 0.0
    %523 = vmatpush1.msra.mxu0 %v189
    %524 = vmatprep.subr.mxu0 0.0
    %525 = vmatpush1.msra.mxu0 %v188
    %526 = vmatprep.subr.mxu0 0.0
    %527 = vmatpush1.msra.mxu0 %v187
    %528 = vmatprep.subr.mxu0 0.0
    %529 = vmatpush2.msra.mxu0 0.0
    %530 = vmatprep.subr.mxu0 0.0
    %531 = vmatpush2.msra.mxu0 0.0
    %532 = vmatprep.subr.mxu0 0.0
    %533 = vmatpush2.msra.mxu0 0.0
    %534 = vmatprep.subr.mxu0 0.0
    %535 = vmatpush2.msra.mxu0 0.0
    %536 = vmatprep.subr.mxu0 0.0
    %537 = vmatpush2.msra.mxu0 0.0
    %538 = vmatprep.subr.mxu0 0.0
    %539 = vmatpush2.msra.mxu0 0.0
    %540 = vmatprep.subr.mxu0 0.0
    %541 = vmatpush2.msra.mxu0 0.0
    %542 = vmatprep.subr.mxu0 0.0
    %543 = vmatpush2.msra.mxu0 0.0
    %544 = vmatprep.subr.mxu0 0.0
    %545 = vmatpush2.msra.mxu0 0.0
    %546 = vmatprep.subr.mxu0 0.0
    %547 = vmatpush2.msra.mxu0 0.0
    %548 = vmatprep.subr.mxu0 0.0
    %549 = vmatpush2.msra.mxu0 0.0
    %550 = vmatprep.subr.mxu0 0.0
    %551 = vmatpush2.msra.mxu0 0.0
    %552 = vmatprep.subr.mxu0 0.0
    %553 = vmatpush2.msra.mxu0 0.0
    %554 = vmatprep.subr.mxu0 0.0
    %555 = vmatpush2.msra.mxu0 0.0
    %556 = vmatprep.subr.mxu0 0.0
    %557 = vmatpush2.msra.mxu0 0.0
    %558 = vmatprep.subr.mxu0 0.0
    %559 = vmatpush2.msra.mxu0 0.0
    %560 = vmatprep.mubr.f32.mxu0 0.0
    %561 = vmatmul.mubr.f32.gmra.mxu0 %v494
    %v562 = vpop.f32.mrf.mxu0
    %v563 = vadd.f32 0.0, %v562
    %v564 = vpop.f32.mrf.mxu0
    %565 = vdwg.mxu0
    %v566 = vadd.f32 %v495, %v563
    %v567 = vtanh.pop %v566
    %v568 = vld [vmem:[#allocation2 + $0x28] sm:$0xff]
    %569 = vmatprep.subr.mxu0 0.0
    %570 = vmatpush1.msra.mxu0 %v202
    %571 = vmatprep.subr.mxu0 0.0
    %572 = vmatpush1.msra.mxu0 %v201
    %573 = vmatprep.subr.mxu0 0.0
    %574 = vmatpush1.msra.mxu0 %v200
    %575 = vmatprep.subr.mxu0 0.0
    %576 = vmatpush1.msra.mxu0 %v199
    %577 = vmatprep.subr.mxu0 0.0
    %578 = vmatpush1.msra.mxu0 %v198
    %579 = vmatprep.subr.mxu0 0.0
    %580 = vmatpush1.msra.mxu0 %v197
    %581 = vmatprep.subr.mxu0 0.0
    %582 = vmatpush1.msra.mxu0 %v196
    %583 = vmatprep.subr.mxu0 0.0
    %584 = vmatpush1.msra.mxu0 %v195
    %585 = vmatprep.subr.mxu0 0.0
    %586 = vmatpush1.msra.mxu0 %v194
    %587 = vmatprep.subr.mxu0 0.0
    %588 = vmatpush1.msra.mxu0 %v193
    %589 = vmatprep.subr.mxu0 0.0
    %590 = vmatpush1.msra.mxu0 %v192
    %591 = vmatprep.subr.mxu0 0.0
    %592 = vmatpush1.msra.mxu0 %v191
    %593 = vmatprep.subr.mxu0 0.0
    %594 = vmatpush1.msra.mxu0 %v190
    %595 = vmatprep.subr.mxu0 0.0
    %596 = vmatpush1.msra.mxu0 %v189
    %597 = vmatprep.subr.mxu0 0.0
    %598 = vmatpush1.msra.mxu0 %v188
    %599 = vmatprep.subr.mxu0 0.0
    %600 = vmatpush1.msra.mxu0 %v187
    %601 = vmatprep.subr.mxu0 0.0
    %602 = vmatpush2.msra.mxu0 0.0
    %603 = vmatprep.subr.mxu0 0.0
    %604 = vmatpush2.msra.mxu0 0.0
    %605 = vmatprep.subr.mxu0 0.0
    %606 = vmatpush2.msra.mxu0 0.0
    %607 = vmatprep.subr.mxu0 0.0
    %608 = vmatpush2.msra.mxu0 0.0
    %609 = vmatprep.subr.mxu0 0.0
    %610 = vmatpush2.msra.mxu0 0.0
    %611 = vmatprep.subr.mxu0 0.0
    %612 = vmatpush2.msra.mxu0 0.0
    %613 = vmatprep.subr.mxu0 0.0
    %614 = vmatpush2.msra.mxu0 0.0
    %615 = vmatprep.subr.mxu0 0.0
    %616 = vmatpush2.msra.mxu0 0.0
    %617 = vmatprep.subr.mxu0 0.0
    %618 = vmatpush2.msra.mxu0 0.0
    %619 = vmatprep.subr.mxu0 0.0
    %620 = vmatpush2.msra.mxu0 0.0
    %621 = vmatprep.subr.mxu0 0.0
    %622 = vmatpush2.msra.mxu0 0.0
    %623 = vmatprep.subr.mxu0 0.0
    %624 = vmatpush2.msra.mxu0 0.0
    %625 = vmatprep.subr.mxu0 0.0
    %626 = vmatpush2.msra.mxu0 0.0
    %627 = vmatprep.subr.mxu0 0.0
    %628 = vmatpush2.msra.mxu0 0.0
    %629 = vmatprep.subr.mxu0 0.0
    %630 = vmatpush2.msra.mxu0 0.0
    %631 = vmatprep.subr.mxu0 0.0
    %632 = vmatpush2.msra.mxu0 0.0
    %633 = vmatprep.mubr.f32.mxu0 0.0
    %634 = vmatmul.mubr.f32.gmra.mxu0 %v567
    %v635 = vpop.f32.mrf.mxu0
    %v636 = vadd.f32 0.0, %v635
    %v637 = vpop.f32.mrf.mxu0
    %638 = vdwg.mxu0
    %v639 = vadd.f32 %v568, %v636
    %v640 = vtanh.pop %v639
    %v641 = vld [vmem:[#allocation2 + $0x30] sm:$0xff]
    %642 = vmatprep.subr.mxu0 0.0
    %643 = vmatpush1.msra.mxu0 %v202
    %644 = vmatprep.subr.mxu0 0.0
    %645 = vmatpush1.msra.mxu0 %v201
    %646 = vmatprep.subr.mxu0 0.0
    %647 = vmatpush1.msra.mxu0 %v200
    %648 = vmatprep.subr.mxu0 0.0
    %649 = vmatpush1.msra.mxu0 %v199
    %650 = vmatprep.subr.mxu0 0.0
    %651 = vmatpush1.msra.mxu0 %v198
    %652 = vmatprep.subr.mxu0 0.0
    %653 = vmatpush1.msra.mxu0 %v197
    %654 = vmatprep.subr.mxu0 0.0
    %655 = vmatpush1.msra.mxu0 %v196
    %656 = vmatprep.subr.mxu0 0.0
    %657 = vmatpush1.msra.mxu0 %v195
    %658 = vmatprep.subr.mxu0 0.0
    %659 = vmatpush1.msra.mxu0 %v194
    %660 = vmatprep.subr.mxu0 0.0
    %661 = vmatpush1.msra.mxu0 %v193
    %662 = vmatprep.subr.mxu0 0.0
    %663 = vmatpush1.msra.mxu0 %v192
    %664 = vmatprep.subr.mxu0 0.0
    %665 = vmatpush1.msra.mxu0 %v191
    %666 = vmatprep.subr.mxu0 0.0
    %667 = vmatpush1.msra.mxu0 %v190
    %668 = vmatprep.subr.mxu0 0.0
    %669 = vmatpush1.msra.mxu0 %v189
    %670 = vmatprep.subr.mxu0 0.0
    %671 = vmatpush1.msra.mxu0 %v188
    %672 = vmatprep.subr.mxu0 0.0
    %673 = vmatpush1.msra.mxu0 %v187
    %674 = vmatprep.subr.mxu0 0.0
    %675 = vmatpush2.msra.mxu0 0.0
    %676 = vmatprep.subr.mxu0 0.0
    %677 = vmatpush2.msra.mxu0 0.0
    %678 = vmatprep.subr.mxu0 0.0
    %679 = vmatpush2.msra.mxu0 0.0
    %680 = vmatprep.subr.mxu0 0.0
    %681 = vmatpush2.msra.mxu0 0.0
    %682 = vmatprep.subr.mxu0 0.0
    %683 = vmatpush2.msra.mxu0 0.0
    %684 = vmatprep.subr.mxu0 0.0
    %685 = vmatpush2.msra.mxu0 0.0
    %686 = vmatprep.subr.mxu0 0.0
    %687 = vmatpush2.msra.mxu0 0.0
    %688 = vmatprep.subr.mxu0 0.0
    %689 = vmatpush2.msra.mxu0 0.0
    %690 = vmatprep.subr.mxu0 0.0
    %691 = vmatpush2.msra.mxu0 0.0
    %692 = vmatprep.subr.mxu0 0.0
    %693 = vmatpush2.msra.mxu0 0.0
    %694 = vmatprep.subr.mxu0 0.0
    %695 = vmatpush2.msra.mxu0 0.0
    %696 = vmatprep.subr.mxu0 0.0
    %697 = vmatpush2.msra.mxu0 0.0
    %698 = vmatprep.subr.mxu0 0.0
    %699 = vmatpush2.msra.mxu0 0.0
    %700 = vmatprep.subr.mxu0 0.0
    %701 = vmatpush2.msra.mxu0 0.0
    %702 = vmatprep.subr.mxu0 0.0
    %703 = vmatpush2.msra.mxu0 0.0
    %704 = vmatprep.subr.mxu0 0.0
    %705 = vmatpush2.msra.mxu0 0.0
    %706 = vmatprep.mubr.f32.mxu0 0.0
    %707 = vmatmul.mubr.f32.gmra.mxu0 %v640
    %v708 = vpop.f32.mrf.mxu0
    %v709 = vadd.f32 0.0, %v708
    %v710 = vpop.f32.mrf.mxu0
    %711 = vdwg.mxu0
    %v712 = vadd.f32 %v641, %v709
    %v713 = vtanh.pop %v712
    %v714 = vld [vmem:[#allocation2 + $0x38] sm:$0xff]
    %715 = vmatprep.subr.mxu0 0.0
    %716 = vmatpush1.msra.mxu0 %v202
    %717 = vmatprep.subr.mxu0 0.0
    %718 = vmatpush1.msra.mxu0 %v201
    %719 = vmatprep.subr.mxu0 0.0
    %720 = vmatpush1.msra.mxu0 %v200
    %721 = vmatprep.subr.mxu0 0.0
    %722 = vmatpush1.msra.mxu0 %v199
    %723 = vmatprep.subr.mxu0 0.0
    %724 = vmatpush1.msra.mxu0 %v198
    %725 = vmatprep.subr.mxu0 0.0
    %726 = vmatpush1.msra.mxu0 %v197
    %727 = vmatprep.subr.mxu0 0.0
    %728 = vmatpush1.msra.mxu0 %v196
    %729 = vmatprep.subr.mxu0 0.0
    %730 = vmatpush1.msra.mxu0 %v195
    %731 = vmatprep.subr.mxu0 0.0
    %732 = vmatpush1.msra.mxu0 %v194
    %733 = vmatprep.subr.mxu0 0.0
    %734 = vmatpush1.msra.mxu0 %v193
    %735 = vmatprep.subr.mxu0 0.0
    %736 = vmatpush1.msra.mxu0 %v192
    %737 = vmatprep.subr.mxu0 0.0
    %738 = vmatpush1.msra.mxu0 %v191
    %739 = vmatprep.subr.mxu0 0.0
    %740 = vmatpush1.msra.mxu0 %v190
    %741 = vmatprep.subr.mxu0 0.0
    %742 = vmatpush1.msra.mxu0 %v189
    %743 = vmatprep.subr.mxu0 0.0
    %744 = vmatpush1.msra.mxu0 %v188
    %745 = vmatprep.subr.mxu0 0.0
    %746 = vmatpush1.msra.mxu0 %v187
    %747 = vmatprep.subr.mxu0 0.0
    %748 = vmatpush2.msra.mxu0 0.0
    %749 = vmatprep.subr.mxu0 0.0
    %750 = vmatpush2.msra.mxu0 0.0
    %751 = vmatprep.subr.mxu0 0.0
    %752 = vmatpush2.msra.mxu0 0.0
    %753 = vmatprep.subr.mxu0 0.0
    %754 = vmatpush2.msra.mxu0 0.0
    %755 = vmatprep.subr.mxu0 0.0
    %756 = vmatpush2.msra.mxu0 0.0
    %757 = vmatprep.subr.mxu0 0.0
    %758 = vmatpush2.msra.mxu0 0.0
    %759 = vmatprep.subr.mxu0 0.0
    %760 = vmatpush2.msra.mxu0 0.0
    %761 = vmatprep.subr.mxu0 0.0
    %762 = vmatpush2.msra.mxu0 0.0
    %763 = vmatprep.subr.mxu0 0.0
    %764 = vmatpush2.msra.mxu0 0.0
    %765 = vmatprep.subr.mxu0 0.0
    %766 = vmatpush2.msra.mxu0 0.0
    %767 = vmatprep.subr.mxu0 0.0
    %768 = vmatpush2.msra.mxu0 0.0
    %769 = vmatprep.subr.mxu0 0.0
    %770 = vmatpush2.msra.mxu0 0.0
    %771 = vmatprep.subr.mxu0 0.0
    %772 = vmatpush2.msra.mxu0 0.0
    %773 = vmatprep.subr.mxu0 0.0
    %774 = vmatpush2.msra.mxu0 0.0
    %775 = vmatprep.subr.mxu0 0.0
    %776 = vmatpush2.msra.mxu0 0.0
    %777 = vmatprep.subr.mxu0 0.0
    %778 = vmatpush2.msra.mxu0 0.0
    %779 = vmatprep.mubr.f32.mxu0 0.0
    %780 = vmatmul.mubr.f32.gmra.mxu0 %v713
    %v781 = vpop.f32.mrf.mxu0
    %v782 = vadd.f32 0.0, %v781
    %v783 = vpop.f32.mrf.mxu0
    %784 = vdwg.mxu0
    %v785 = vadd.f32 %v714, %v782
    %v786 = vtanh.pop %v785
    %v787 = vld [vmem:[#allocation5] sm:$0xff]
    %v788 = vld [vmem:[#allocation5 + $0x8] sm:$0xff]
    %v789 = vld [vmem:[#allocation5 + $0x10] sm:$0xff]
    %v790 = vld [vmem:[#allocation5 + $0x18] sm:$0xff]
    %v791 = vld [vmem:[#allocation5 + $0x20] sm:$0xff]
    %v792 = vld [vmem:[#allocation5 + $0x28] sm:$0xff]
    %v793 = vld [vmem:[#allocation5 + $0x30] sm:$0xff]
    %v794 = vld [vmem:[#allocation5 + $0x38] sm:$0xff]
    %v795 = vld [vmem:[#allocation5 + $0x40] sm:$0xff]
    %v796 = vld [vmem:[#allocation5 + $0x48] sm:$0xff]
    %v797 = vld [vmem:[#allocation5 + $0x50] sm:$0xff]
    %v798 = vld [vmem:[#allocation5 + $0x58] sm:$0xff]
    %v799 = vld [vmem:[#allocation5 + $0x60] sm:$0xff]
    %v800 = vld [vmem:[#allocation5 + $0x68] sm:$0xff]
    %v801 = vld [vmem:[#allocation5 + $0x70] sm:$0xff]
    %v802 = vld [vmem:[#allocation5 + $0x78] sm:$0xff]
    %v803 = vld [vmem:[%s5] sm:$0x1]
    %v805 = vlaneseq
    %v806 = vshrl.u32 %v805, 7
    %v807 = vsub.s32 0, %v806
    %v808 = vrot.slane %v803, %v807
    %810 = vmatprep.subr.mxu0 0.0
    %811 = vmatpush1.msra.mxu0 %v802
    %812 = vmatprep.subr.mxu0 0.0
    %813 = vmatpush1.msra.mxu0 %v801
    %814 = vmatprep.subr.mxu0 0.0
    %815 = vmatpush1.msra.mxu0 %v800
    %816 = vmatprep.subr.mxu0 0.0
    %817 = vmatpush1.msra.mxu0 %v799
    %818 = vmatprep.subr.mxu0 0.0
    %819 = vmatpush1.msra.mxu0 %v798
    %820 = vmatprep.subr.mxu0 0.0
    %821 = vmatpush1.msra.mxu0 %v797
    %822 = vmatprep.subr.mxu0 0.0
    %823 = vmatpush1.msra.mxu0 %v796
    %824 = vmatprep.subr.mxu0 0.0
    %825 = vmatpush1.msra.mxu0 %v795
    %826 = vmatprep.subr.mxu0 0.0
    %827 = vmatpush1.msra.mxu0 %v794
    %828 = vmatprep.subr.mxu0 0.0
    %829 = vmatpush1.msra.mxu0 %v793
    %830 = vmatprep.subr.mxu0 0.0
    %831 = vmatpush1.msra.mxu0 %v792
    %832 = vmatprep.subr.mxu0 0.0
    %833 = vmatpush1.msra.mxu0 %v791
    %834 = vmatprep.subr.mxu0 0.0
    %835 = vmatpush1.msra.mxu0 %v790
    %836 = vmatprep.subr.mxu0 0.0
    %837 = vmatpush1.msra.mxu0 %v789
    %838 = vmatprep.subr.mxu0 0.0
    %839 = vmatpush1.msra.mxu0 %v788
    %840 = vmatprep.subr.mxu0 0.0
    %841 = vmatpush1.msra.mxu0 %v787
    %842 = vmatprep.subr.mxu0 0.0
    %843 = vmatpush2.msra.mxu0 0.0
    %844 = vmatprep.subr.mxu0 0.0
    %845 = vmatpush2.msra.mxu0 0.0
    %846 = vmatprep.subr.mxu0 0.0
    %847 = vmatpush2.msra.mxu0 0.0
    %848 = vmatprep.subr.mxu0 0.0
    %849 = vmatpush2.msra.mxu0 0.0
    %850 = vmatprep.subr.mxu0 0.0
    %851 = vmatpush2.msra.mxu0 0.0
    %852 = vmatprep.subr.mxu0 0.0
    %853 = vmatpush2.msra.mxu0 0.0
    %854 = vmatprep.subr.mxu0 0.0
    %855 = vmatpush2.msra.mxu0 0.0
    %856 = vmatprep.subr.mxu0 0.0
    %857 = vmatpush2.msra.mxu0 0.0
    %858 = vmatprep.subr.mxu0 0.0
    %859 = vmatpush2.msra.mxu0 0.0
    %860 = vmatprep.subr.mxu0 0.0
    %861 = vmatpush2.msra.mxu0 0.0
    %862 = vmatprep.subr.mxu0 0.0
    %863 = vmatpush2.msra.mxu0 0.0
    %864 = vmatprep.subr.mxu0 0.0
    %865 = vmatpush2.msra.mxu0 0.0
    %866 = vmatprep.subr.mxu0 0.0
    %867 = vmatpush2.msra.mxu0 0.0
    %868 = vmatprep.subr.mxu0 0.0
    %869 = vmatpush2.msra.mxu0 0.0
    %870 = vmatprep.subr.mxu0 0.0
    %871 = vmatpush2.msra.mxu0 0.0
    %872 = vmatprep.subr.mxu0 0.0
    %873 = vmatpush2.msra.mxu0 0.0
    %874 = vmatprep.mubr.f32.mxu0 0.0
    %875 = vmatmul.mubr.f32.gmra.mxu0 %v786
    %v876 = vpop.f32.mrf.mxu0
    %v877 = vadd.f32 %v808, %v876
    %v878 = vpop.f32.mrf.mxu0
    %879 = vdwg.mxu0
    %880 = vst [vmem:[%s6] sm:$0xff] %v877
    // Predicated region
    $region34: #{_rnn_forward_impl.1} parent=1 // pred_check
      _
    $region35: #{_rnn_forward_impl.1} parent=1 // pred_check_branch
      %882 = sbr.rel (0) target = $region37
    $region36: #{_rnn_forward_impl.1} parent=1 // pred_region
      _
    $region37: #{_rnn_forward_impl.1} parent=1 // pred_fallthru
      _
    // Predicated region
    $region38: #{_rnn_forward_impl.1} parent=1 // pred_check
      _
    $region39: #{_rnn_forward_impl.1} parent=1 // pred_check_branch
      %884 = sbr.rel (0) target = $region41
    $region40: #{_rnn_forward_impl.1} parent=1 // pred_region
      _
    $region41: #{_rnn_forward_impl.1} parent=1 // pred_fallthru
      _
    %885 = vsyncpa [#allocation4], 1
    %886 = vsyncpa [#allocation6], 1

</llo_original>
